<compile_context>
chip_gen: v6e
topology: v6e:2x2x1
jax: 0.10.0
libtpu: 0.0.40
codegen_flags: <defaults>
</compile_context>

<pallas_src>
import math

import jax
import jax.numpy as jnp
from jax.experimental import pallas as pl
from jax.experimental.pallas import tpu as pltpu


def _dynamics_kernel(z_ref, coef_ref, out_ref):
    z = z_ref[...]                                   # (tile_m, D_eff) interleaved
    d = z.shape[-1]
    # Lane-neighbor views (circular; wrapped lanes are multiplied by 0 coeffs).
    # Full-width roll may move data across vregs when D_eff > 128; XLU has
    # plenty of slack in this HBM-bound kernel, so this is not on the
    # critical path.
    z_next = pltpu.roll(z, shift=d - 1, axis=1)      # z_next[i] = z[(i + 1) % d]
    z_prev = pltpu.roll(z, shift=1, axis=1)          # z_prev[i] = z[(i - 1) % d]
    a = coef_ref[0:1, :]                             # sublane-aligned single rows
    b = coef_ref[8:9, :]
    c = coef_ref[16:17, :]
    out_ref[...] = a * z + b * z_next + c * z_prev


def complex_diagonal_dynamics(z_t, roots, n_latents, *, tile_m=None,
                              vmem_budget_bytes=16 << 20):
    """Pallas implementation of ComplexDiagonalDynamics.forward.

    z_t:   (..., 2 * iir_order * n_latents) float, interleaved re/im.
    roots: (iir_order, 2) float32 parameters: [:, 0] = magnitude, [:, 1] = angle.
    """
    iir_order = roots.shape[0]
    D = z_t.shape[-1]
    half = iir_order * n_latents
    assert D == 2 * half, "last dim must equal 2 * iir_order * n_latents"
    dtype = z_t.dtype
    itemsize = jnp.dtype(dtype).itemsize

    # --- tiny parameter prep (iir_order / D sized, negligible cost) ---
    a_root = roots[:, 0] * jnp.cos(roots[:, 1])      # real part of root
    b_root = roots[:, 0] * jnp.sin(roots[:, 1])      # imag part of root
    a_ch = jnp.repeat(a_root, n_latents)             # (half,)  einops '(n c)' repeat
    b_ch = jnp.repeat(b_root, n_latents)             # (half,)
    zeros = jnp.zeros_like(b_ch)
    # Interleaved coefficient rows, shape (1, D):
    a_row = jnp.stack([a_ch, a_ch], axis=-1).reshape(1, D)
    b_row = jnp.stack([-b_ch, zeros], axis=-1).reshape(1, D)   # multiplies z_next
    c_row = jnp.stack([zeros, b_ch], axis=-1).reshape(1, D)    # multiplies z_prev

    lead_shape = z_t.shape[:-1]
    M = 1
    for s in lead_shape:
        M *= s
    z_flat = z_t.reshape(M, D)                       # contiguous, free reshape

    # --- lane-dense folding when D is not a multiple of 128 ---------------
    # Fold g original rows into one lane-dense row of width g*D.  The zero
    # coefficient structure (B=0 on odd lanes, C=0 on even lanes) makes the
    # +-1 rolls across folded-row boundaries contribute exactly zero.
    fold = 1
    if D % 128 != 0:
        fold = 128 // math.gcd(D, 128)
    if fold > 1:
        M_pad = pl.cdiv(M, fold) * fold
        if M_pad != M:
            z_flat = jnp.pad(z_flat, ((0, M_pad - M), (0, 0)))
        M_rows = M_pad // fold
        D_eff = fold * D
        z_flat = z_flat.reshape(M_rows, D_eff)
        a_row = jnp.tile(a_row, (1, fold))
        b_row = jnp.tile(b_row, (1, fold))
        c_row = jnp.tile(c_row, (1, fold))
    else:
        M_rows = M
        D_eff = D

    # Pack A/B/C into a single 8-sublane-aligned operand: rows 0-7 = A,
    # 8-15 = B, 16-23 = C (one input stream instead of three (1, D) ones).
    coefs = jnp.concatenate([
        jnp.broadcast_to(a_row, (8, D_eff)),
        jnp.broadcast_to(b_row, (8, D_eff)),
        jnp.broadcast_to(c_row, (8, D_eff)),
    ], axis=0).astype(dtype)                         # (24, D_eff)

    # --- block-size heuristic ---------------------------------------------
    if tile_m is None:
        # in + out streams, double-buffered.
        bytes_per_row = 2 * 2 * D_eff * itemsize
        tile_m = max(8, vmem_budget_bytes // bytes_per_row)
        # Keep >= a few grid steps when there is enough work so the
        # ("parallel",) axis can shard across both v7x TensorCores.
        min_grid_steps = 4
        if M_rows >= min_grid_steps * 8:
            tile_m = min(tile_m, pl.cdiv(M_rows, min_grid_steps))
    if tile_m >= M_rows:
        tile_m = M_rows                              # full-extent block is always legal
    else:
        tile_m = max(8, (tile_m // 8) * 8)           # respect (8, 128) tiling rule

    grid = (pl.cdiv(M_rows, tile_m),)                # remainder handled by masked block

    # Explicit scoped-VMEM limit: big enough for the double-buffered in/out
    # streams (v5e scoped default is only 16 MiB), small enough for v7x's
    # 64 MiB physical VMEM.
    block_bytes = tile_m * D_eff * itemsize
    coef_bytes = 24 * D_eff * itemsize
    footprint = 2 * 2 * block_bytes + 2 * coef_bytes
    vmem_limit_bytes = int(min(max(footprint + (2 << 20), 16 << 20), 48 << 20))

    # TODO(synk): if this op runs inside a per-timestep recurrence, fuse the
    # time loop into the kernel (z resident in VMEM scratch) or stream z in
    # bf16 — the standalone f32 kernel is pinned to the HBM roofline.
    out = pl.pallas_call(
        _dynamics_kernel,
        out_shape=jax.ShapeDtypeStruct((M_rows, D_eff), dtype),
        grid_spec=pltpu.PrefetchScalarGridSpec(
            num_scalar_prefetch=0,
            grid=grid,
            in_specs=[
                pl.BlockSpec((tile_m, D_eff), lambda i: (i, 0)),   # z (interleaved)
                pl.BlockSpec((24, D_eff), lambda i: (0, 0)),       # packed A/B/C
            ],
            out_specs=pl.BlockSpec((tile_m, D_eff), lambda i: (i, 0)),
        ),
        compiler_params=pltpu.CompilerParams(
            dimension_semantics=("parallel",),       # M axis shards across TCs (v7x)
            vmem_limit_bytes=vmem_limit_bytes,
        ),
    )(z_flat, coefs)

    if fold > 1:
        out = out.reshape(M_rows * fold, D)[:M]
    return out.reshape(*lead_shape, D)


def _reference(z_t, roots, n_latents):
    """Pure-JAX reference mirroring the PyTorch forward exactly."""
    a = roots[:, 0] * jnp.cos(roots[:, 1])
    b = roots[:, 0] * jnp.sin(roots[:, 1])
    a_rep = jnp.repeat(a, n_latents)
    b_rep = jnp.repeat(b, n_latents)
    re_z = z_t[..., 0::2]
    im_z = z_t[..., 1::2]
    out = jnp.zeros_like(z_t)
    out = out.at[..., 0::2].set(re_z * a_rep - im_z * b_rep)
    out = out.at[..., 1::2].set(re_z * b_rep + im_z * a_rep)
    return out


if __name__ == "__main__":
    # Module hyperparameters (small, consistent with the forward):
    iir_order = 4
    n_latents = 16
    batch = 2
    seq = 8
    D = 2 * iir_order * n_latents  # 128

    key = jax.random.PRNGKey(0)
    k_r, k_th, k_z, k_z2, k_z3, k_z4 = jax.random.split(key, 6)

    # Deterministic parameter init matching the PyTorch __init__ distributions:
    #   roots[:, 0] ~ 0.9 + 0.1 * U[0,1),  roots[:, 1] ~ pi/6 + pi/6 * U[0,1)
    mag = 0.9 + 0.1 * jax.random.uniform(k_r, (iir_order,), dtype=jnp.float32)
    ang = (math.pi / 6) + (math.pi / 6) * jax.random.uniform(
        k_th, (iir_order,), dtype=jnp.float32)
    roots = jnp.stack([mag, ang], axis=-1)  # (iir_order, 2)

    z_t = jax.random.normal(k_z, (batch, seq, D), dtype=jnp.float32)

    z_tp1 = complex_diagonal_dynamics(z_t, roots, n_latents)
    z_tp1 = jax.block_until_ready(z_tp1)

    ref = _reference(z_t, roots, n_latents)
    assert z_tp1.shape == z_t.shape and z_tp1.dtype == z_t.dtype
    assert jnp.allclose(z_tp1, ref, atol=1e-5, rtol=1e-5)

    # Exercise the non-divisible / masked-remainder path: M = 13*2 = 26 rows
    # with tile_m=8 -> grid of 4 with a partial last block.
    z_odd = jax.random.normal(k_z2, (13, 2, D), dtype=jnp.float32)
    z_odd_out = jax.block_until_ready(
        complex_diagonal_dynamics(z_odd, roots, n_latents, tile_m=8))
    assert jnp.allclose(z_odd_out, _reference(z_odd, roots, n_latents),
                        atol=1e-5, rtol=1e-5)

    # Exercise the lane-dense fold path: D = 96 (not a multiple of 128),
    # fold = 4, M = 48 divisible by the fold.
    n_lat96 = 12
    D96 = 2 * iir_order * n_lat96  # 96
    z_fold = jax.random.normal(k_z3, (6, 8, D96), dtype=jnp.float32)
    z_fold_out = jax.block_until_ready(
        complex_diagonal_dynamics(z_fold, roots, n_lat96))
    assert jnp.allclose(z_fold_out, _reference(z_fold, roots, n_lat96),
                        atol=1e-5, rtol=1e-5)

    # Fold path with row padding: M = 7 not divisible by fold = 4.
    z_fold_pad = jax.random.normal(k_z4, (7, D96), dtype=jnp.float32)
    z_fold_pad_out = jax.block_until_ready(
        complex_diagonal_dynamics(z_fold_pad, roots, n_lat96))
    assert jnp.allclose(z_fold_pad_out, _reference(z_fold_pad, roots, n_lat96),
                        atol=1e-5, rtol=1e-5)

    print("KERNEL_OK")
</pallas_src>

<mosaic_0001>
module attributes {stable_mosaic.version = 11 : i64} {
  func.func @_dynamics_kernel(%arg0: i32, %arg1: memref<16x128xf32, #tpu.memory_space<vmem>>, %arg2: memref<24x128xf32, #tpu.memory_space<vmem>>, %arg3: memref<16x128xf32, #tpu.memory_space<vmem>>) attributes {dimension_semantics = [#tpu.dimension_semantics<parallel>], iteration_bounds = array<i64: 1>, scalar_prefetch = 0 : i64, scratch_operands = 0 : i64, tpu.core_type = #tpu.core_type<tc>, window_params = [{transform_indices = @transform_0, window_bounds = array<i64: 16, 128>}, {pipeline_mode = #tpu.pipeline_mode<synchronous>, transform_indices = @transform_1, window_bounds = array<i64: 24, 128>}, {transform_indices = @transform_2, window_bounds = array<i64: 16, 128>}]} {
    %c0 = arith.constant 0 : index
    %c0_0 = arith.constant 0 : index
    %0 = vector.load %arg1[%c0, %c0_0] : memref<16x128xf32, #tpu.memory_space<vmem>>, vector<16x128xf32>
    %c127_i32 = arith.constant 127 : i32
    %1 = tpu.dynamic_rotate %0 by %c127_i32 dim 1 : vector<16x128xf32>, i32 -> vector<16x128xf32>
    %c1_i32 = arith.constant 1 : i32
    %2 = tpu.dynamic_rotate %0 by %c1_i32 dim 1 : vector<16x128xf32>, i32 -> vector<16x128xf32>
    %c0_1 = arith.constant 0 : index
    %c0_2 = arith.constant 0 : index
    %3 = vector.load %arg2[%c0_1, %c0_2] : memref<24x128xf32, #tpu.memory_space<vmem>>, vector<1x128xf32>
    %c8 = arith.constant 8 : index
    %c0_3 = arith.constant 0 : index
    %4 = vector.load %arg2[%c8, %c0_3] : memref<24x128xf32, #tpu.memory_space<vmem>>, vector<1x128xf32>
    %c16 = arith.constant 16 : index
    %c0_4 = arith.constant 0 : index
    %5 = vector.load %arg2[%c16, %c0_4] : memref<24x128xf32, #tpu.memory_space<vmem>>, vector<1x128xf32>
    %6 = vector.broadcast %3 : vector<1x128xf32> to vector<16x128xf32>
    %7 = arith.mulf %6, %0 : vector<16x128xf32>
    %8 = vector.broadcast %4 : vector<1x128xf32> to vector<16x128xf32>
    %9 = arith.mulf %8, %1 : vector<16x128xf32>
    %10 = arith.addf %7, %9 : vector<16x128xf32>
    %11 = vector.broadcast %5 : vector<1x128xf32> to vector<16x128xf32>
    %12 = arith.mulf %11, %2 : vector<16x128xf32>
    %13 = arith.addf %10, %12 : vector<16x128xf32>
    %c0_5 = arith.constant 0 : index
    %c0_6 = arith.constant 0 : index
    %14 = vector.load %arg3[%c0_5, %c0_6] : memref<16x128xf32, #tpu.memory_space<vmem>>, vector<16x128xf32>
    tpu.vector_store %arg3[%c0_5, %c0_6], %13 {strides = array<i32>} : memref<16x128xf32, #tpu.memory_space<vmem>>, vector<16x128xf32>,
    return
  }
  func.func @transform_0(%arg0: i32) -> (i32, i32) {
    %c0_i32 = arith.constant 0 : i32
    %c0_i32_0 = arith.constant 0 : i32
    return %arg0, %c0_i32 : i32, i32
  }
  func.func @transform_1(%arg0: i32) -> (i32, i32) {
    %c0_i32 = arith.constant 0 : i32
    %c0_i32_0 = arith.constant 0 : i32
    %c0_i32_1 = arith.constant 0 : i32
    return %c0_i32, %c0_i32_0 : i32, i32
  }
  func.func @transform_2(%arg0: i32) -> (i32, i32) {
    %c0_i32 = arith.constant 0 : i32
    %c0_i32_0 = arith.constant 0 : i32
    return %arg0, %c0_i32 : i32, i32
  }
}

</mosaic_0001>

<llo_original>
// kernel: tpu_custom_call.1
$region0: #{tpu_custom_call.1}
  #allocation0 [shape = 'u32[]', space=smem, size = 0x4, offset = 0x4, fixed_abs, tag = 'smem constant byte address 0x4 - core index']
  #allocation1 [shape = 'u32[144,128]{1,0:T(1,128)}', space=vmem, size = 0x12000, scoped, tag = 'internal scratch']
  %s0 = inlined_call_operand.hbm [shape: f32[16,128], index: 0, kind: input, shape index: {}]
  %s1 = inlined_call_operand.hbm [shape: f32[24,128], index: 1, kind: input, shape index: {}]
  %s2 = inlined_call_operand.hbm [shape: f32[16,128], index: 2, kind: output, shape index: {}]
  %s3 = sld [smem:[#allocation0]]
  $region26: #{tpu_custom_call.1} parent=0
    _
  %s5 = ssub.s32 1, %s3
  %s6 = scalar_select 0, %s5, %s3
  $region1: #{tpu_custom_call.1} parent=0
    #allocation2 [shape = 'u8[8192]{0}', space=vmem, size = 0x2000, scoped, tag = 'input window, operand 0, single buffered']
    #allocation3 [shape = 's32[1]{0}', space=sflag, size = 0x4, scoped, tag = 'scoped memory for tpu_custom_call.1']
    #allocation4 [shape = 's32[1]{0}', space=sflag, size = 0x4, scoped, tag = 'scoped memory for tpu_custom_call.1']
    #allocation5 [shape = 'u8[12288]{0}', space=vmem, size = 0x3000, scoped, tag = 'input window, operand 1, single buffered']
    #allocation6 [shape = 's32[1]{0}', space=sflag, size = 0x4, scoped, tag = 'scoped memory for tpu_custom_call.1']
    #allocation7 [shape = 'u8[8192]{0}', space=vmem, size = 0x2000, scoped, tag = 'output window, operand 0, single buffered']
    %7 = vsyncpa [#allocation3], 0
    %8 = vsyncpa [#allocation6], 0
    %9 = vsyncpa [#allocation4], 0
    // Predicated region
    $region2: #{tpu_custom_call.1} parent=1 // pred_check
      _
    $region3: #{tpu_custom_call.1} parent=1 // pred_check_branch
      %11 = sbr.rel (0) target = $region5
    $region4: #{tpu_custom_call.1} parent=1 // pred_region
      %s13 = ssub.s32 256, 256
      %14 = vsyncadd [#allocation3], %s13
      %s15 = sshll.u32 [#allocation2], 4
      %s16 = int_to_ptr.vmem [resolvable:$true] %s15
      %21 = dma.hbm_to_vmem [thread:$0]  %s0, 256, %s16, [#allocation3], 128, 128, 8
    $region5: #{tpu_custom_call.1} parent=1 // pred_fallthru
      _
    // Predicated region
    $region6: #{tpu_custom_call.1} parent=1 // pred_check
      _
    $region7: #{tpu_custom_call.1} parent=1 // pred_check_branch
      %23 = sbr.rel (0) target = $region9
    $region8: #{tpu_custom_call.1} parent=1 // pred_region
      %s25 = ssub.s32 384, 384
      %26 = vsyncadd [#allocation6], %s25
      %s27 = sshll.u32 [#allocation5], 4
      %s28 = int_to_ptr.vmem [resolvable:$true] %s27
      %33 = dma.hbm_to_vmem [thread:$0]  %s1, 384, %s28, [#allocation6], 128, 128, 8
    $region9: #{tpu_custom_call.1} parent=1 // pred_fallthru
      _
    // Predicated region
    $region10: #{tpu_custom_call.1} parent=1 // pred_check
      _
    $region11: #{tpu_custom_call.1} parent=1 // pred_check_branch
      %35 = sbr.rel (0) target = $region13
    $region12: #{tpu_custom_call.1} parent=1 // pred_region
      %36 = dma.done [#allocation3], 256
    $region13: #{tpu_custom_call.1} parent=1 // pred_fallthru
      _
    // Predicated region
    $region14: #{tpu_custom_call.1} parent=1 // pred_check
      _
    $region15: #{tpu_custom_call.1} parent=1 // pred_check_branch
      %38 = sbr.rel (0) target = $region17
    $region16: #{tpu_custom_call.1} parent=1 // pred_region
      %39 = dma.done [#allocation6], 384
    $region17: #{tpu_custom_call.1} parent=1 // pred_fallthru
      _
    %v40 = vld [vmem:[#allocation2] sm:$0xff]
    %v41 = vld [vmem:[#allocation2 + $0x8] sm:$0xff]
    %42 = vrot.lane.b32.xlu0 %v40, 127
    %v43 = vpop.permute.xlu0 %42
    %44 = vrot.lane.b32.xlu0 %v41, 127
    %v45 = vpop.permute.xlu0 %44
    %46 = vrot.lane.b32.xlu0 %v40, 1
    %v47 = vpop.permute.xlu0 %46
    %48 = vrot.lane.b32.xlu0 %v41, 1
    %v49 = vpop.permute.xlu0 %48
    %v50 = vld [vmem:[#allocation5] sm:$0x1]
    %v51 = vld [vmem:[#allocation5 + $0x8] sm:$0x1]
    %v52 = vld [vmem:[#allocation5 + $0x10] sm:$0x1]
    %v53 = vlaneseq
    %v54 = vshrl.u32 %v53, 7
    %v55 = vsub.s32 0, %v54
    %v56 = vrot.slane %v50, %v55
    %v57 = vmul.f32 %v56, %v40
    %v58 = vmul.f32 %v56, %v41
    %v59 = vlaneseq
    %v60 = vshrl.u32 %v59, 7
    %v61 = vsub.s32 0, %v60
    %v62 = vrot.slane %v51, %v61
    %v63 = vmul.f32 %v62, %v43
    %v64 = vmul.f32 %v62, %v45
    %v65 = vadd.f32 %v57, %v63
    %v66 = vadd.f32 %v58, %v64
    %v67 = vlaneseq
    %v68 = vshrl.u32 %v67, 7
    %v69 = vsub.s32 0, %v68
    %v70 = vrot.slane %v52, %v69
    %v71 = vmul.f32 %v70, %v47
    %v72 = vmul.f32 %v70, %v49
    %v73 = vadd.f32 %v65, %v71
    %v74 = vadd.f32 %v66, %v72
    %75 = vst [vmem:[#allocation7] sm:$0xff] %v73
    %76 = vst [vmem:[#allocation7 + $0x8] sm:$0xff] %v74
    // Predicated region
    $region18: #{tpu_custom_call.1} parent=1 // pred_check
      _
    $region19: #{tpu_custom_call.1} parent=1 // pred_check_branch
      %78 = sbr.rel (0) target = $region21
    $region20: #{tpu_custom_call.1} parent=1 // pred_region
      %s80 = ssub.s32 256, 256
      %81 = vsyncadd [#allocation4], %s80
      %s82 = sshll.u32 [#allocation7], 4
      %s83 = int_to_ptr.vmem [resolvable:$true] %s82
      %88 = dma.vmem_to_hbm [thread:$0]  %s83, 256, %s2, [#allocation4], 128, 128, 8
    $region21: #{tpu_custom_call.1} parent=1 // pred_fallthru
      _
    // Predicated region
    $region22: #{tpu_custom_call.1} parent=1 // pred_check
      _
    $region23: #{tpu_custom_call.1} parent=1 // pred_check_branch
      %90 = sbr.rel (0) target = $region25
    $region24: #{tpu_custom_call.1} parent=1 // pred_region
      %91 = dma.done [#allocation4], 256
    $region25: #{tpu_custom_call.1} parent=1 // pred_fallthru
      _
    %92 = vsyncpa [#allocation3], 1
    %93 = vsyncpa [#allocation6], 1
    %94 = vsyncpa [#allocation4], 1

</llo_original>
